<compile_context>
chip_gen: v7x
topology: tpu7x:2x2x1
jax: 0.10.0
libtpu: 0.0.40
codegen_flags: <defaults>
</compile_context>

<pallas_src>
import functools

import jax
import jax.numpy as jnp
from jax.experimental import pallas as pl
from jax.experimental.pallas import tpu as pltpu


def _round_up(x, m):
    return (x + m - 1) // m * m


def _mlp_kernel(n_lin, out_pads, compute_dtype, x_ref, b_ref, *refs):
    """Fused MLP forward for one batch tile.

    refs layout:
      refs[0:n_lin]               per-layer weight refs in HBM (memory_space=ANY),
                                  pre-transposed + padded [in_pad_i, out_pad_i]
      refs[n_lin]                 out_ref [bt, out_pad_last] f32 (auto-pipelined VMEM)
      refs[n_lin+1 : 2*n_lin+1]   per-layer VMEM weight scratch (single-buffered,
                                  persistent across grid steps)
      refs[2*n_lin+1]             DMA semaphore array, shape (n_lin,)

    ReLU is applied after the hidden linears only (layers 1 .. n_lin-2, 0-based),
    matching the PyTorch Sequential (no ReLU after the first Linear or the output
    Linear).
    """
    w_hbm = refs[:n_lin]
    out_ref = refs[n_lin]
    wbufs = refs[n_lin + 1: 2 * n_lin + 1]
    wsem = refs[2 * n_lin + 1]

    first_step = pl.program_id(0) == 0

    def wcopy(i):
        return pltpu.make_async_copy(w_hbm[i], wbufs[i], wsem.at[i])

    # Weights are DMA'd HBM->VMEM exactly once (grid step 0) and stay resident in
    # scratch for all later batch tiles.  The prefetch chain overlaps layer i+1's
    # weight DMA with layer i's MXU work.
    @pl.when(first_step)
    def _():
        wcopy(0).start()

    h = x_ref[...]                                        # f32 [bt, in_pad0]
    for i in range(n_lin):
        @pl.when(first_step)
        def _(i=i):
            wcopy(i).wait()
            if i + 1 < n_lin:
                wcopy(i + 1).start()                      # prefetch next layer
        wt = wbufs[i][...]                                # [in_pad, out_pad] compute_dtype
        b = b_ref[pl.ds(i, 1), pl.ds(0, out_pads[i])]     # [1, out_pad] f32
        h = jnp.dot(h.astype(compute_dtype), wt,
                    preferred_element_type=jnp.float32) + b
        if 1 <= i <= n_lin - 2:
            h = jnp.maximum(h, 0.0)
    out_ref[...] = h.astype(out_ref.dtype)                # lane-dense (out_pad % 128 == 0)


def _vmem_capacity_bytes():
    """Per-core VMEM capacity; conservative fallback that is legal on all gens."""
    try:
        cap = int(pltpu.get_tpu_info().vmem_capacity_bytes)
        if cap > 0:
            return cap
    except Exception:
        pass
    return 64 << 20  # safe on v5e/v6e (128 MiB) and v7x (64 MiB)


def generator_bha_forward(x, params, *, n_layer, batch_tile=None,
                          compute_dtype=jnp.bfloat16):
    """x: [B, latent_dim] f32; params: list of (W[out,in], b[out]) PyTorch layout."""
    x = jnp.asarray(x, jnp.float32)
    B, latent_dim = x.shape
    n_lin = n_layer + 1
    assert len(params) == n_lin

    # ---- pad parameters (zero padding is exact). Only OUTPUT dims go to 128; the
    # first layer's K dim (and x's feature dim) are rounded to 8 only, so x's HBM
    # footprint is not inflated ~8x for small latent_dim. ----
    in0_pad = _round_up(latent_dim, 8)
    weights, out_pads = [], []
    prev = in0_pad
    for (w, _) in params:
        w = jnp.asarray(w, jnp.float32)
        fan_out, fan_in = w.shape
        assert fan_in <= prev
        out_pad = _round_up(fan_out, 128)
        wt = jnp.pad(w.T, ((0, prev - fan_in), (0, out_pad - fan_out)))
        weights.append(wt.astype(compute_dtype))          # bf16 weights, f32 MXU acc
        out_pads.append(out_pad)
        prev = out_pad
    out_last_pad = out_pads[-1]
    max_out_pad = max(out_pads)

    # ---- pack all biases into one grid-invariant f32 input ----
    b_all = jnp.zeros((n_lin, max_out_pad), jnp.float32)
    for i, (w, b) in enumerate(params):
        b_all = b_all.at[i, : w.shape[0]].set(jnp.asarray(b, jnp.float32))

    # ---- batch tiling: bf16-pack aligned (multiple of 16), large default tile ----
    if batch_tile is None:
        batch_tile = min(512, _round_up(B, 16))
    batch_tile = max(16, _round_up(batch_tile, 16))
    B_pad = _round_up(B, batch_tile)
    x_pad = jnp.pad(x, ((0, B_pad - B), (0, in0_pad - latent_dim)))
    grid = (B_pad // batch_tile,)

    in_specs = [
        pl.BlockSpec((batch_tile, in0_pad), lambda i: (i, 0)),   # x tile (pipelined)
        pl.BlockSpec(b_all.shape, lambda i: (0, 0)),             # packed biases (tiny)
    ]
    for _ in weights:
        in_specs.append(pl.BlockSpec(memory_space=pl.ANY))       # weights stay in HBM
    out_specs = pl.BlockSpec((batch_tile, out_last_pad), lambda i: (i, 0))

    scratch = [pltpu.VMEM(w.shape, compute_dtype) for w in weights]
    scratch.append(pltpu.SemaphoreType.DMA((n_lin,)))

    # ---- VMEM budget: single-buffered weight scratch + 2x I/O tiles + acts ----
    w_itemsize = weights[0].dtype.itemsize
    w_bytes = sum(int(w.size) * w_itemsize for w in weights)          # 1x (scratch)
    io_bytes = 2 * 4 * batch_tile * (in0_pad + out_last_pad)          # double-buffered
    bias_bytes = 2 * int(b_all.size) * 4
    act_bytes = 3 * 4 * batch_tile * max_out_pad
    needed = w_bytes + io_bytes + bias_bytes + act_bytes + (4 << 20)
    vmem_limit = int(min(max(needed, 32 << 20),
                         int(_vmem_capacity_bytes() * 0.875)))

    flops = 2 * B_pad * sum(int(w.shape[0]) * int(w.shape[1]) for w in weights)
    bytes_accessed = (int(x_pad.size) * 4 + int(b_all.size) * 4 + w_bytes
                      + int(B_pad) * int(out_last_pad) * 4)

    kernel = functools.partial(_mlp_kernel, n_lin, tuple(out_pads), compute_dtype)
    out_pad_arr = pl.pallas_call(
        kernel,
        grid=grid,
        out_shape=jax.ShapeDtypeStruct((B_pad, out_last_pad), jnp.float32),
        in_specs=in_specs,
        out_specs=out_specs,
        scratch_shapes=scratch,
        compiler_params=pltpu.CompilerParams(
            # "arbitrary": the weight cache is filled on program_id==0, which
            # requires sequential iteration of the batch axis (see TODO above for
            # v7x 2-core sharding).  On v5e/v6e this is perf-equivalent to parallel.
            dimension_semantics=("arbitrary",),
            vmem_limit_bytes=vmem_limit),
        cost_estimate=pl.CostEstimate(flops=flops, transcendentals=0,
                                      bytes_accessed=bytes_accessed),
    )(x_pad, b_all, *weights)

    return out_pad_arr[:B, :latent_dim]


def init_params(key, latent_dim, n_layer, n_hidden):
    """Deterministic init matching nn.Linear default (uniform +-1/sqrt(fan_in))."""
    dims = ([(latent_dim, n_hidden)]
            + [(n_hidden, n_hidden)] * (n_layer - 1)
            + [(n_hidden, latent_dim)])
    params = []
    for (fan_in, fan_out) in dims:
        key, kw, kb = jax.random.split(key, 3)
        bound = 1.0 / float(fan_in) ** 0.5
        w = jax.random.uniform(kw, (fan_out, fan_in), jnp.float32, -bound, bound)
        b = jax.random.uniform(kb, (fan_out,), jnp.float32, -bound, bound)
        params.append((w, b))
    return params


def _reference_forward(x, params, n_layer, compute_dtype=jnp.float32):
    """Pure-JAX reference mirroring the PyTorch Sequential (optionally with the
    same bf16 operand rounding the kernel uses)."""
    n_lin = n_layer + 1
    h = jnp.asarray(x, jnp.float32)
    for i, (w, b) in enumerate(params):
        wt = jnp.asarray(w, jnp.float32).T.astype(compute_dtype)
        h = jnp.dot(h.astype(compute_dtype), wt,
                    preferred_element_type=jnp.float32) + jnp.asarray(b, jnp.float32)
        if 1 <= i <= n_lin - 2:
            h = jnp.maximum(h, 0.0)
    return h


if __name__ == "__main__":
    latent_dim, n_layer, n_hidden = 16, 3, 32
    batch = 8

    key = jax.random.PRNGKey(0)
    key, kx = jax.random.split(key)
    x = jax.random.normal(kx, (batch, latent_dim), jnp.float32)
    params = init_params(key, latent_dim, n_layer, n_hidden)

    out = generator_bha_forward(x, params, n_layer=n_layer)
    out = jax.block_until_ready(out)
    assert out.shape == (batch, latent_dim)

    # Exact-math reference (same bf16 operand rounding the kernel performs).
    ref_bf16 = _reference_forward(x, params, n_layer, compute_dtype=jnp.bfloat16)
    assert jnp.allclose(out, ref_bf16, atol=2e-3, rtol=2e-3), \
        float(jnp.max(jnp.abs(out - ref_bf16)))

    # Loose sanity check against the full-f32 PyTorch-equivalent math.
    ref_f32 = _reference_forward(x, params, n_layer, compute_dtype=jnp.float32)
    assert jnp.allclose(out, ref_f32, atol=5e-2, rtol=5e-2), \
        float(jnp.max(jnp.abs(out - ref_f32)))

    print("KERNEL_OK")
</pallas_src>

<mosaic_0001>
module attributes {stable_mosaic.version = 11 : i64} {
  func.func @_mlp_kernel(%arg0: i32, %arg1: memref<16x16xf32, #tpu.memory_space<vmem>>, %arg2: memref<4x128xf32, #tpu.memory_space<vmem>>, %arg3: memref<16x128xbf16, #tpu.memory_space<any>>, %arg4: memref<128x128xbf16, #tpu.memory_space<any>>, %arg5: memref<128x128xbf16, #tpu.memory_space<any>>, %arg6: memref<128x128xbf16, #tpu.memory_space<any>>, %arg7: memref<16x128xf32, #tpu.memory_space<vmem>>, %arg8: memref<16x128xbf16, #tpu.memory_space<vmem>>, %arg9: memref<128x128xbf16, #tpu.memory_space<vmem>>, %arg10: memref<128x128xbf16, #tpu.memory_space<vmem>>, %arg11: memref<128x128xbf16, #tpu.memory_space<vmem>>, %arg12: memref<4x!tpu.dma_semaphore, #tpu.memory_space<semaphore_mem>>) attributes {dimension_semantics = [#tpu.dimension_semantics<arbitrary>], iteration_bounds = array<i64: 1>, scalar_prefetch = 0 : i64, scratch_operands = 5 : i64, tpu.core_type = #tpu.core_type<tc>, window_params = [{transform_indices = @transform_0, window_bounds = array<i64: 16, 16>}, {pipeline_mode = #tpu.pipeline_mode<synchronous>, transform_indices = @transform_1, window_bounds = array<i64: 4, 128>}, {}, {}, {}, {}, {transform_indices = @transform_6, window_bounds = array<i64: 16, 128>}]} {
    %c0_i32 = arith.constant 0 : i32
    %0 = arith.cmpi eq, %arg0, %c0_i32 : i32
    %1 = arith.extui %0 : i1 to i32
    %c0_i32_0 = arith.constant 0 : i32
    %2 = arith.cmpi ne, %1, %c0_i32_0 : i32
    scf.if %2 {
      %c0_i32_26 = arith.constant 0 : i32
      %41 = tpu.memref_slice %arg12[%c0_i32_26] : memref<4x!tpu.dma_semaphore, #tpu.memory_space<semaphore_mem>> -> memref<1x!tpu.dma_semaphore, #tpu.memory_space<semaphore_mem>>
      %42 = tpu.memref_squeeze %41 : memref<1x!tpu.dma_semaphore, #tpu.memory_space<semaphore_mem>> -> memref<!tpu.dma_semaphore, #tpu.memory_space<semaphore_mem>>
      tpu.enqueue_dma source(%arg3 : memref<16x128xbf16, #tpu.memory_space<any>>) target(%arg8 : memref<16x128xbf16, #tpu.memory_space<vmem>>) target_semaphore(%42 : memref<!tpu.dma_semaphore, #tpu.memory_space<semaphore_mem>>)
    } else {
    }
    %c0 = arith.constant 0 : index
    %c0_1 = arith.constant 0 : index
    %3 = vector.load %arg1[%c0, %c0_1] : memref<16x16xf32, #tpu.memory_space<vmem>>, vector<16x16xf32>
    %4 = arith.extui %0 : i1 to i32
    %c0_i32_2 = arith.constant 0 : i32
    %5 = arith.cmpi ne, %4, %c0_i32_2 : i32
    scf.if %5 {
      %c0_i32_26 = arith.constant 0 : i32
      %41 = tpu.memref_slice %arg12[%c0_i32_26] : memref<4x!tpu.dma_semaphore, #tpu.memory_space<semaphore_mem>> -> memref<1x!tpu.dma_semaphore, #tpu.memory_space<semaphore_mem>>
      %42 = tpu.memref_squeeze %41 : memref<1x!tpu.dma_semaphore, #tpu.memory_space<semaphore_mem>> -> memref<!tpu.dma_semaphore, #tpu.memory_space<semaphore_mem>>
      tpu.wait_dma2 semaphore(%42 : memref<!tpu.dma_semaphore, #tpu.memory_space<semaphore_mem>>) src(%arg3 : memref<16x128xbf16, #tpu.memory_space<any>>) dst(%arg8 : memref<16x128xbf16, #tpu.memory_space<vmem>>)
      %c1_i32 = arith.constant 1 : i32
      %43 = tpu.memref_slice %arg12[%c1_i32] : memref<4x!tpu.dma_semaphore, #tpu.memory_space<semaphore_mem>> -> memref<1x!tpu.dma_semaphore, #tpu.memory_space<semaphore_mem>>
      %44 = tpu.memref_squeeze %43 : memref<1x!tpu.dma_semaphore, #tpu.memory_space<semaphore_mem>> -> memref<!tpu.dma_semaphore, #tpu.memory_space<semaphore_mem>>
      tpu.enqueue_dma source(%arg4 : memref<128x128xbf16, #tpu.memory_space<any>>) target(%arg9 : memref<128x128xbf16, #tpu.memory_space<vmem>>) target_semaphore(%44 : memref<!tpu.dma_semaphore, #tpu.memory_space<semaphore_mem>>)
    } else {
    }
    %c0_3 = arith.constant 0 : index
    %c0_4 = arith.constant 0 : index
    %6 = vector.load %arg8[%c0_3, %c0_4] : memref<16x128xbf16, #tpu.memory_space<vmem>>, vector<16x128xbf16>
    %c0_5 = arith.constant 0 : index
    %c0_6 = arith.constant 0 : index
    %7 = vector.load %arg2[%c0_5, %c0_6] : memref<4x128xf32, #tpu.memory_space<vmem>>, vector<1x128xf32>
    %8 = arith.truncf %3 : vector<16x16xf32> to vector<16x16xbf16>
    %cst = arith.constant dense<0.000000e+00> : vector<16x128xf32>
    %9 = tpu.matmul %8, %6, %cst {dimension_numbers = #tpu.dot_dimension_numbers<[1], [0], [0], [1], [0, 0, 1, 1], [], []>} : vector<16x16xbf16>, vector<16x128xbf16>, vector<16x128xf32> -> vector<16x128xf32>
    %10 = vector.broadcast %7 : vector<1x128xf32> to vector<16x128xf32>
    %11 = arith.addf %9, %10 : vector<16x128xf32>
    %12 = arith.extui %0 : i1 to i32
    %c0_i32_7 = arith.constant 0 : i32
    %13 = arith.cmpi ne, %12, %c0_i32_7 : i32
    scf.if %13 {
      %c1_i32 = arith.constant 1 : i32
      %41 = tpu.memref_slice %arg12[%c1_i32] : memref<4x!tpu.dma_semaphore, #tpu.memory_space<semaphore_mem>> -> memref<1x!tpu.dma_semaphore, #tpu.memory_space<semaphore_mem>>
      %42 = tpu.memref_squeeze %41 : memref<1x!tpu.dma_semaphore, #tpu.memory_space<semaphore_mem>> -> memref<!tpu.dma_semaphore, #tpu.memory_space<semaphore_mem>>
      tpu.wait_dma2 semaphore(%42 : memref<!tpu.dma_semaphore, #tpu.memory_space<semaphore_mem>>) src(%arg4 : memref<128x128xbf16, #tpu.memory_space<any>>) dst(%arg9 : memref<128x128xbf16, #tpu.memory_space<vmem>>)
      %c2_i32 = arith.constant 2 : i32
      %43 = tpu.memref_slice %arg12[%c2_i32] : memref<4x!tpu.dma_semaphore, #tpu.memory_space<semaphore_mem>> -> memref<1x!tpu.dma_semaphore, #tpu.memory_space<semaphore_mem>>
      %44 = tpu.memref_squeeze %43 : memref<1x!tpu.dma_semaphore, #tpu.memory_space<semaphore_mem>> -> memref<!tpu.dma_semaphore, #tpu.memory_space<semaphore_mem>>
      tpu.enqueue_dma source(%arg5 : memref<128x128xbf16, #tpu.memory_space<any>>) target(%arg10 : memref<128x128xbf16, #tpu.memory_space<vmem>>) target_semaphore(%44 : memref<!tpu.dma_semaphore, #tpu.memory_space<semaphore_mem>>)
    } else {
    }
    %c0_8 = arith.constant 0 : index
    %c0_9 = arith.constant 0 : index
    %14 = vector.load %arg9[%c0_8, %c0_9] : memref<128x128xbf16, #tpu.memory_space<vmem>>, vector<128x128xbf16>
    %c1 = arith.constant 1 : index
    %c0_10 = arith.constant 0 : index
    %15 = vector.load %arg2[%c1, %c0_10] : memref<4x128xf32, #tpu.memory_space<vmem>>, vector<1x128xf32>
    %16 = arith.truncf %11 : vector<16x128xf32> to vector<16x128xbf16>
    %cst_11 = arith.constant dense<0.000000e+00> : vector<16x128xf32>
    %17 = tpu.matmul %16, %14, %cst_11 {dimension_numbers = #tpu.dot_dimension_numbers<[1], [0], [0], [1], [0, 0, 1, 1], [], []>} : vector<16x128xbf16>, vector<128x128xbf16>, vector<16x128xf32> -> vector<16x128xf32>
    %18 = vector.broadcast %15 : vector<1x128xf32> to vector<16x128xf32>
    %19 = arith.addf %17, %18 : vector<16x128xf32>
    %cst_12 = arith.constant 0.000000e+00 : f32
    %20 = vector.broadcast %cst_12 : f32 to vector<16x128xf32>
    %21 = arith.maximumf %19, %20 : vector<16x128xf32>
    %22 = arith.extui %0 : i1 to i32
    %c0_i32_13 = arith.constant 0 : i32
    %23 = arith.cmpi ne, %22, %c0_i32_13 : i32
    scf.if %23 {
      %c2_i32 = arith.constant 2 : i32
      %41 = tpu.memref_slice %arg12[%c2_i32] : memref<4x!tpu.dma_semaphore, #tpu.memory_space<semaphore_mem>> -> memref<1x!tpu.dma_semaphore, #tpu.memory_space<semaphore_mem>>
      %42 = tpu.memref_squeeze %41 : memref<1x!tpu.dma_semaphore, #tpu.memory_space<semaphore_mem>> -> memref<!tpu.dma_semaphore, #tpu.memory_space<semaphore_mem>>
      tpu.wait_dma2 semaphore(%42 : memref<!tpu.dma_semaphore, #tpu.memory_space<semaphore_mem>>) src(%arg5 : memref<128x128xbf16, #tpu.memory_space<any>>) dst(%arg10 : memref<128x128xbf16, #tpu.memory_space<vmem>>)
      %c3_i32 = arith.constant 3 : i32
      %43 = tpu.memref_slice %arg12[%c3_i32] : memref<4x!tpu.dma_semaphore, #tpu.memory_space<semaphore_mem>> -> memref<1x!tpu.dma_semaphore, #tpu.memory_space<semaphore_mem>>
      %44 = tpu.memref_squeeze %43 : memref<1x!tpu.dma_semaphore, #tpu.memory_space<semaphore_mem>> -> memref<!tpu.dma_semaphore, #tpu.memory_space<semaphore_mem>>
      tpu.enqueue_dma source(%arg6 : memref<128x128xbf16, #tpu.memory_space<any>>) target(%arg11 : memref<128x128xbf16, #tpu.memory_space<vmem>>) target_semaphore(%44 : memref<!tpu.dma_semaphore, #tpu.memory_space<semaphore_mem>>)
    } else {
    }
    %c0_14 = arith.constant 0 : index
    %c0_15 = arith.constant 0 : index
    %24 = vector.load %arg10[%c0_14, %c0_15] : memref<128x128xbf16, #tpu.memory_space<vmem>>, vector<128x128xbf16>
    %c2 = arith.constant 2 : index
    %c0_16 = arith.constant 0 : index
    %25 = vector.load %arg2[%c2, %c0_16] : memref<4x128xf32, #tpu.memory_space<vmem>>, vector<1x128xf32>
    %26 = arith.truncf %21 : vector<16x128xf32> to vector<16x128xbf16>
    %cst_17 = arith.constant dense<0.000000e+00> : vector<16x128xf32>
    %27 = tpu.matmul %26, %24, %cst_17 {dimension_numbers = #tpu.dot_dimension_numbers<[1], [0], [0], [1], [0, 0, 1, 1], [], []>} : vector<16x128xbf16>, vector<128x128xbf16>, vector<16x128xf32> -> vector<16x128xf32>
    %28 = vector.broadcast %25 : vector<1x128xf32> to vector<16x128xf32>
    %29 = arith.addf %27, %28 : vector<16x128xf32>
    %cst_18 = arith.constant 0.000000e+00 : f32
    %30 = vector.broadcast %cst_18 : f32 to vector<16x128xf32>
    %31 = arith.maximumf %29, %30 : vector<16x128xf32>
    %32 = arith.extui %0 : i1 to i32
    %c0_i32_19 = arith.constant 0 : i32
    %33 = arith.cmpi ne, %32, %c0_i32_19 : i32
    scf.if %33 {
      %c3_i32 = arith.constant 3 : i32
      %41 = tpu.memref_slice %arg12[%c3_i32] : memref<4x!tpu.dma_semaphore, #tpu.memory_space<semaphore_mem>> -> memref<1x!tpu.dma_semaphore, #tpu.memory_space<semaphore_mem>>
      %42 = tpu.memref_squeeze %41 : memref<1x!tpu.dma_semaphore, #tpu.memory_space<semaphore_mem>> -> memref<!tpu.dma_semaphore, #tpu.memory_space<semaphore_mem>>
      tpu.wait_dma2 semaphore(%42 : memref<!tpu.dma_semaphore, #tpu.memory_space<semaphore_mem>>) src(%arg6 : memref<128x128xbf16, #tpu.memory_space<any>>) dst(%arg11 : memref<128x128xbf16, #tpu.memory_space<vmem>>)
    } else {
    }
    %c0_20 = arith.constant 0 : index
    %c0_21 = arith.constant 0 : index
    %34 = vector.load %arg11[%c0_20, %c0_21] : memref<128x128xbf16, #tpu.memory_space<vmem>>, vector<128x128xbf16>
    %c3 = arith.constant 3 : index
    %c0_22 = arith.constant 0 : index
    %35 = vector.load %arg2[%c3, %c0_22] : memref<4x128xf32, #tpu.memory_space<vmem>>, vector<1x128xf32>
    %36 = arith.truncf %31 : vector<16x128xf32> to vector<16x128xbf16>
    %cst_23 = arith.constant dense<0.000000e+00> : vector<16x128xf32>
    %37 = tpu.matmul %36, %34, %cst_23 {dimension_numbers = #tpu.dot_dimension_numbers<[1], [0], [0], [1], [0, 0, 1, 1], [], []>} : vector<16x128xbf16>, vector<128x128xbf16>, vector<16x128xf32> -> vector<16x128xf32>
    %38 = vector.broadcast %35 : vector<1x128xf32> to vector<16x128xf32>
    %39 = arith.addf %37, %38 : vector<16x128xf32>
    %c0_24 = arith.constant 0 : index
    %c0_25 = arith.constant 0 : index
    %40 = vector.load %arg7[%c0_24, %c0_25] : memref<16x128xf32, #tpu.memory_space<vmem>>, vector<16x128xf32>
    tpu.vector_store %arg7[%c0_24, %c0_25], %39 {strides = array<i32>} : memref<16x128xf32, #tpu.memory_space<vmem>>, vector<16x128xf32>,
    return
  }
  func.func @transform_0(%arg0: i32) -> (i32, i32) {
    %c0_i32 = arith.constant 0 : i32
    %c0_i32_0 = arith.constant 0 : i32
    return %arg0, %c0_i32 : i32, i32
  }
  func.func @transform_1(%arg0: i32) -> (i32, i32) {
    %c0_i32 = arith.constant 0 : i32
    %c0_i32_0 = arith.constant 0 : i32
    %c0_i32_1 = arith.constant 0 : i32
    return %c0_i32, %c0_i32_0 : i32, i32
  }
  func.func @transform_6(%arg0: i32) -> (i32, i32) {
    %c0_i32 = arith.constant 0 : i32
    %c0_i32_0 = arith.constant 0 : i32
    return %arg0, %c0_i32 : i32, i32
  }
}

</mosaic_0001>

<llo_original>
// kernel: tpu_custom_call.1
$region0: #{tpu_custom_call.1}
  #allocation0 [shape = 'u32[]', space=smem, size = 0x4, offset = 0x4, fixed_abs, tag = 'smem constant byte address 0x4 - core index']
  #allocation1 [shape = 'u32[144,128]{1,0:T(1,128)}', space=vmem, size = 0x12000, scoped, tag = 'internal scratch']
  #allocation2 [shape = 'bf16[16,128]{1,0:T(16,128)(2,1)}', space=vmem, size = 0x1000, scoped, tag = 'scratch operand']
  #allocation3 [shape = 'bf16[128,128]{1,0:T(16,128)(2,1)}', space=vmem, size = 0x8000, scoped, tag = 'scratch operand']
  #allocation4 [shape = 'bf16[128,128]{1,0:T(16,128)(2,1)}', space=vmem, size = 0x8000, scoped, tag = 'scratch operand']
  #allocation5 [shape = 'bf16[128,128]{1,0:T(16,128)(2,1)}', space=vmem, size = 0x8000, scoped, tag = 'scratch operand']
  #allocation6 [shape = 's32[4]{0}', space=sflag, size = 0x10, scoped, tag = 'scratch operand']
  #allocation13 [shape = 's32[]', space=sflag, size = 0x4, offset = 0, fixed_abs, tag = 'sflag constant byte address 0x0 - dummy sync flag']
  #allocation14 [shape = 's32[]', space=sflag, size = 0x4, offset = 0, fixed_abs, tag = 'sflag constant byte address 0x0 - dummy sync flag']
  #allocation15 [shape = 'u32[]', space=smem, size = 0x4, offset = 0x44, fixed_abs, tag = 'smem constant byte address 0x44 - assertion arg 0']
  #allocation16 [shape = 'u32[]', space=smem, size = 0x4, offset = 0x48, fixed_abs, tag = 'smem constant byte address 0x48 - assertion arg 1']
  #allocation17 [shape = 's32[]', space=sflag, size = 0x4, offset = 0, fixed_abs, tag = 'sflag constant byte address 0x0 - dummy sync flag']
  #allocation18 [shape = 's32[]', space=sflag, size = 0x4, offset = 0, fixed_abs, tag = 'sflag constant byte address 0x0 - dummy sync flag']
  #allocation19 [shape = 's32[]', space=sflag, size = 0x4, offset = 0, fixed_abs, tag = 'sflag constant byte address 0x0 - dummy sync flag']
  #allocation20 [shape = 's32[]', space=sflag, size = 0x4, offset = 0, fixed_abs, tag = 'sflag constant byte address 0x0 - dummy sync flag']
  #allocation21 [shape = 's32[]', space=sflag, size = 0x4, offset = 0, fixed_abs, tag = 'sflag constant byte address 0x0 - dummy sync flag']
  #allocation22 [shape = 's32[]', space=sflag, size = 0x4, offset = 0, fixed_abs, tag = 'sflag constant byte address 0x0 - dummy sync flag']
  %s0 = inlined_call_operand.hbm [shape: f32[16,16], index: 0, kind: input, shape index: {}]
  %s1 = inlined_call_operand.hbm [shape: f32[4,128], index: 1, kind: input, shape index: {}]
  %s2 = inlined_call_operand.hbm [shape: bf16[16,128], index: 2, kind: input, shape index: {}]
  %s3 = inlined_call_operand.hbm [shape: bf16[128,128], index: 3, kind: input, shape index: {}]
  %s4 = inlined_call_operand.hbm [shape: bf16[128,128], index: 4, kind: input, shape index: {}]
  %s5 = inlined_call_operand.hbm [shape: bf16[128,128], index: 5, kind: input, shape index: {}]
  %s6 = inlined_call_operand.hbm [shape: f32[16,128], index: 6, kind: output, shape index: {}]
  %s7 = sld [smem:[#allocation0]]
  $region62: #{tpu_custom_call.1} parent=0
    _
  %s9 = ssub.s32 1, %s7
  %s10 = scalar_select 0, %s9, %s7
  $region1: #{tpu_custom_call.1} parent=0
    #allocation7 [shape = 'u8[8192]{0}', space=vmem, size = 0x2000, scoped, tag = 'input window, operand 0, single buffered']
    #allocation8 [shape = 's32[1]{0}', space=sflag, size = 0x4, scoped, tag = 'scoped memory for tpu_custom_call.1']
    #allocation9 [shape = 's32[1]{0}', space=sflag, size = 0x4, scoped, tag = 'scoped memory for tpu_custom_call.1']
    #allocation10 [shape = 'u8[2048]{0}', space=vmem, size = 0x800, scoped, tag = 'input window, operand 1, single buffered']
    #allocation11 [shape = 's32[1]{0}', space=sflag, size = 0x4, scoped, tag = 'scoped memory for tpu_custom_call.1']
    #allocation12 [shape = 'u8[8192]{0}', space=vmem, size = 0x2000, scoped, tag = 'output window, operand 0, single buffered']
    %11 = vsyncpa [#allocation8], 0
    %12 = vsyncpa [#allocation11], 0
    %13 = vsyncpa [#allocation9], 0
    // Predicated region
    $region2: #{tpu_custom_call.1} parent=1 // pred_check
      _
    $region3: #{tpu_custom_call.1} parent=1 // pred_check_branch
      %15 = sbr.rel (0) target = $region5
    $region4: #{tpu_custom_call.1} parent=1 // pred_region
      %s17 = ssub.s32 256, 256
      %18 = vsyncadd [#allocation8], %s17
      %s19 = sshll.u32 [#allocation7], 4
      %s20 = int_to_ptr.vmem [resolvable:$true] %s19
      %25 = dma.hbm_to_vmem [thread:$0]  %s0, 256, %s20, [#allocation8], 128, 128, 8
    $region5: #{tpu_custom_call.1} parent=1 // pred_fallthru
      _
    // Predicated region
    $region6: #{tpu_custom_call.1} parent=1 // pred_check
      _
    $region7: #{tpu_custom_call.1} parent=1 // pred_check_branch
      %27 = sbr.rel (0) target = $region9
    $region8: #{tpu_custom_call.1} parent=1 // pred_region
      %s29 = ssub.s32 64, 64
      %30 = vsyncadd [#allocation11], %s29
      %s32 = sshll.u32 [#allocation10], 4
      %s33 = int_to_ptr.vmem [resolvable:$true] %s32
      %35 = dma.hbm_to_vmem [thread:$0]  %s1, 64, %s33, [#allocation11]
    $region9: #{tpu_custom_call.1} parent=1 // pred_fallthru
      _
    // Predicated region
    $region10: #{tpu_custom_call.1} parent=1 // pred_check
      _
    $region11: #{tpu_custom_call.1} parent=1 // pred_check_branch
      %37 = sbr.rel (0) target = $region13
    $region12: #{tpu_custom_call.1} parent=1 // pred_region
      %38 = dma.done [#allocation8], 256
    $region13: #{tpu_custom_call.1} parent=1 // pred_fallthru
      _
    // Predicated region
    $region14: #{tpu_custom_call.1} parent=1 // pred_check
      _
    $region15: #{tpu_custom_call.1} parent=1 // pred_check_branch
      %40 = sbr.rel (0) target = $region17
    $region16: #{tpu_custom_call.1} parent=1 // pred_region
      %41 = dma.done [#allocation11], 64
    $region17: #{tpu_custom_call.1} parent=1 // pred_fallthru
      _
    %p43 = scmp.eq.s32.totalorder 0, 0
    // Predicated region
    $region18: #{tpu_custom_call.1} parent=1 // pred_check
      %p44 = pneg %p43
    $region19: #{tpu_custom_call.1} parent=1 // pred_check_branch
      %46 = sbr.rel (%p44) target = $region21
    $region20: #{tpu_custom_call.1} parent=1 // pred_region
      // Predicated region
      $region22: #{tpu_custom_call.1} parent=20 // pred_check
        _
      $region23: #{tpu_custom_call.1} parent=20 // pred_check_branch
        %48 = sbr.rel target = $region25
      $region24: #{tpu_custom_call.1} parent=20 // pred_region
        %49 = sst [smem:[#allocation15]] [#allocation14]
        %50 = sst [smem:[#allocation16]] [#allocation13]
      $region25: #{tpu_custom_call.1} parent=20 // pred_fallthru
        _
      %52 = shalt.err (0)
      %s54 = sshll.u32 [#allocation2], 4
      %s55 = int_to_ptr.vmem [resolvable:$true] %s54
      %57 = dma.hbm_to_vmem [thread:$0]  %s2, 128, %s55, [#allocation6]
    $region21: #{tpu_custom_call.1} parent=1 // pred_fallthru
      _
    %v58 = vld [vmem:[#allocation7] sm:$0xff]
    %v59 = vld [vmem:[#allocation7 + $0x8] sm:$0xff]
    // Predicated region
    $region26: #{tpu_custom_call.1} parent=1 // pred_check
      %p60 = pneg %p43
    $region27: #{tpu_custom_call.1} parent=1 // pred_check_branch
      %62 = sbr.rel (%p60) target = $region29
    $region28: #{tpu_custom_call.1} parent=1 // pred_region
      %s63 = smul.u32 4, 2
      %s64 = smul.u32 %s63, 1
      %s65 = sshll.u32 %s64, 4
      %66 = dma.done [#allocation6], %s65
      %s67 = scalar_lea.sflag [#allocation6], 1
      // Predicated region
      $region30: #{tpu_custom_call.1} parent=28 // pred_check
        _
      $region31: #{tpu_custom_call.1} parent=28 // pred_check_branch
        %69 = sbr.rel target = $region33
      $region32: #{tpu_custom_call.1} parent=28 // pred_region
        %70 = sst [smem:[#allocation15]] [#allocation18]
        %71 = sst [smem:[#allocation16]] [#allocation17]
      $region33: #{tpu_custom_call.1} parent=28 // pred_fallthru
        _
      %73 = shalt.err (0)
      %s75 = sshll.u32 [#allocation3], 4
      %s76 = int_to_ptr.vmem [resolvable:$true] %s75
      %78 = dma.hbm_to_vmem [thread:$0]  %s3, 1024, %s76, %s67
    $region29: #{tpu_custom_call.1} parent=1 // pred_fallthru
      _
    %v79 = vld [vmem:[#allocation2] sm:$0xff]
    %v80 = vld [vmem:[#allocation10] sm:$0x1]
    %v81 = vpack.c.bf16 %v59, %v58
    %v82 = vlaneseq
    %v83 = vshrl.u32 %v82, 7
    %v84 = vsub.s32 0, %v83
    %v85 = vrot.slane %v80, %v84
    %vm86 = vcmask 130048
    %v88 = vsel %vm86, %v81, 0
    %90 = vmatprep.subr.bf16.mxu0 0
    %91 = vmatpush1.bf16.msra.mxu0 %v79
    %92 = vmatprep.subr.bf16.mxu0 0
    %93 = vmatpush1.bf16.msra.mxu0 0
    %94 = vmatprep.subr.bf16.mxu0 0
    %95 = vmatpush1.bf16.msra.mxu0 0
    %96 = vmatprep.subr.bf16.mxu0 0
    %97 = vmatpush1.bf16.msra.mxu0 0
    %98 = vmatprep.subr.bf16.mxu0 0
    %99 = vmatpush1.bf16.msra.mxu0 0
    %100 = vmatprep.subr.bf16.mxu0 0
    %101 = vmatpush1.bf16.msra.mxu0 0
    %102 = vmatprep.subr.bf16.mxu0 0
    %103 = vmatpush1.bf16.msra.mxu0 0
    %104 = vmatprep.subr.bf16.mxu0 0
    %105 = vmatpush1.bf16.msra.mxu0 0
    %106 = vmatprep.subr.bf16.mxu0 0
    %107 = vmatpush1.bf16.msra.mxu0 0
    %108 = vmatprep.subr.bf16.mxu0 0
    %109 = vmatpush1.bf16.msra.mxu0 0
    %110 = vmatprep.subr.bf16.mxu0 0
    %111 = vmatpush1.bf16.msra.mxu0 0
    %112 = vmatprep.subr.bf16.mxu0 0
    %113 = vmatpush1.bf16.msra.mxu0 0
    %114 = vmatprep.subr.bf16.mxu0 0
    %115 = vmatpush1.bf16.msra.mxu0 0
    %116 = vmatprep.subr.bf16.mxu0 0
    %117 = vmatpush1.bf16.msra.mxu0 0
    %118 = vmatprep.subr.bf16.mxu0 0
    %119 = vmatpush1.bf16.msra.mxu0 0
    %120 = vmatprep.subr.bf16.mxu0 0
    %121 = vmatpush1.bf16.msra.mxu0 0
    %122 = vmatprep.mubr.bf16.mxu0 0
    %123 = vmatmul.mubr.bf16.gmra.mrb[0].mxu0 %v88
    %v124 = vpop.f32.mrb[0].mxu0
    %v125 = vadd.f32 %v85, %v124
    %v126 = vpop.f32.mrb[0].mxu0
    %v127 = vpop.f32.mrb[0].mxu0
    %v128 = vadd.f32 %v85, %v127
    %v129 = vpop.f32.mrb[0].mxu0
    %130 = vdwg.mxu0
    // Predicated region
    $region34: #{tpu_custom_call.1} parent=1 // pred_check
      %p131 = pneg %p43
    $region35: #{tpu_custom_call.1} parent=1 // pred_check_branch
      %133 = sbr.rel (%p131) target = $region37
    $region36: #{tpu_custom_call.1} parent=1 // pred_region
      %s134 = scalar_lea.sflag [#allocation6], 1
      %s135 = smul.u32 4, 16
      %s136 = smul.u32 %s135, 1
      %s137 = sshll.u32 %s136, 4
      %138 = dma.done %s134, %s137
      %s139 = scalar_lea.sflag [#allocation6], 2
      // Predicated region
      $region38: #{tpu_custom_call.1} parent=36 // pred_check
        _
      $region39: #{tpu_custom_call.1} parent=36 // pred_check_branch
        %141 = sbr.rel target = $region41
      $region40: #{tpu_custom_call.1} parent=36 // pred_region
        %142 = sst [smem:[#allocation15]] [#allocation20]
        %143 = sst [smem:[#allocation16]] [#allocation19]
      $region41: #{tpu_custom_call.1} parent=36 // pred_fallthru
        _
      %145 = shalt.err (0)
      %s147 = sshll.u32 [#allocation4], 4
      %s148 = int_to_ptr.vmem [resolvable:$true] %s147
      %150 = dma.hbm_to_vmem [thread:$0]  %s4, 1024, %s148, %s139
    $region37: #{tpu_custom_call.1} parent=1 // pred_fallthru
      _
    %v151 = vld [vmem:[#allocation3] sm:$0xff]
    %v152 = vld [vmem:[#allocation3 + $0x8] sm:$0xff]
    %v153 = vld [vmem:[#allocation3 + $0x10] sm:$0xff]
    %v154 = vld [vmem:[#allocation3 + $0x18] sm:$0xff]
    %v155 = vld [vmem:[#allocation3 + $0x20] sm:$0xff]
    %v156 = vld [vmem:[#allocation3 + $0x28] sm:$0xff]
    %v157 = vld [vmem:[#allocation3 + $0x30] sm:$0xff]
    %v158 = vld [vmem:[#allocation3 + $0x38] sm:$0xff]
    %v159 = vld [vmem:[#allocation10 + $0x1] sm:$0x1]
    %v160 = vpack.c.bf16 %v128, %v125
    %v161 = vlaneseq
    %v162 = vshrl.u32 %v161, 7
    %v163 = vsub.s32 0, %v162
    %v164 = vrot.slane %v159, %v163
    %165 = vmatprep.subr.bf16.mxu0 0
    %166 = vmatpush1.bf16.msra.mxu0 %v151
    %167 = vmatprep.subr.bf16.mxu0 0
    %168 = vmatpush1.bf16.msra.mxu0 %v152
    %169 = vmatprep.subr.bf16.mxu0 0
    %170 = vmatpush1.bf16.msra.mxu0 %v153
    %171 = vmatprep.subr.bf16.mxu0 0
    %172 = vmatpush1.bf16.msra.mxu0 %v154
    %173 = vmatprep.subr.bf16.mxu0 0
    %174 = vmatpush1.bf16.msra.mxu0 %v155
    %175 = vmatprep.subr.bf16.mxu0 0
    %176 = vmatpush1.bf16.msra.mxu0 %v156
    %177 = vmatprep.subr.bf16.mxu0 0
    %178 = vmatpush1.bf16.msra.mxu0 %v157
    %179 = vmatprep.subr.bf16.mxu0 0
    %180 = vmatpush1.bf16.msra.mxu0 %v158
    %181 = vmatprep.subr.bf16.mxu0 0
    %182 = vmatpush1.bf16.msra.mxu0 0
    %183 = vmatprep.subr.bf16.mxu0 0
    %184 = vmatpush1.bf16.msra.mxu0 0
    %185 = vmatprep.subr.bf16.mxu0 0
    %186 = vmatpush1.bf16.msra.mxu0 0
    %187 = vmatprep.subr.bf16.mxu0 0
    %188 = vmatpush1.bf16.msra.mxu0 0
    %189 = vmatprep.subr.bf16.mxu0 0
    %190 = vmatpush1.bf16.msra.mxu0 0
    %191 = vmatprep.subr.bf16.mxu0 0
    %192 = vmatpush1.bf16.msra.mxu0 0
    %193 = vmatprep.subr.bf16.mxu0 0
    %194 = vmatpush1.bf16.msra.mxu0 0
    %195 = vmatprep.subr.bf16.mxu0 0
    %196 = vmatpush1.bf16.msra.mxu0 0
    %197 = vmatprep.mubr.bf16.mxu0 0
    %198 = vmatmul.mubr.bf16.gmra.mrb[0].mxu0 %v160
    %v199 = vpop.f32.mrb[0].mxu0
    %v200 = vadd.f32 %v164, %v199
    %v201 = vpop.f32.mrb[0].mxu0
    %v202 = vpop.f32.mrb[0].mxu0
    %v203 = vadd.f32 %v164, %v202
    %v204 = vpop.f32.mrb[0].mxu0
    %205 = vdwg.mxu0
    %v206 = vmax.f32 %v200, 0.0
    %v207 = vmax.f32 %v203, 0.0
    // Predicated region
    $region42: #{tpu_custom_call.1} parent=1 // pred_check
      %p208 = pneg %p43
    $region43: #{tpu_custom_call.1} parent=1 // pred_check_branch
      %210 = sbr.rel (%p208) target = $region45
    $region44: #{tpu_custom_call.1} parent=1 // pred_region
      %s211 = scalar_lea.sflag [#allocation6], 2
      %s212 = smul.u32 4, 16
      %s213 = smul.u32 %s212, 1
      %s214 = sshll.u32 %s213, 4
      %215 = dma.done %s211, %s214
      %s216 = scalar_lea.sflag [#allocation6], 3
      // Predicated region
      $region46: #{tpu_custom_call.1} parent=44 // pred_check
        _
      $region47: #{tpu_custom_call.1} parent=44 // pred_check_branch
        %218 = sbr.rel target = $region49
      $region48: #{tpu_custom_call.1} parent=44 // pred_region
        %219 = sst [smem:[#allocation15]] [#allocation22]
        %220 = sst [smem:[#allocation16]] [#allocation21]
      $region49: #{tpu_custom_call.1} parent=44 // pred_fallthru
        _
      %222 = shalt.err (0)
      %s224 = sshll.u32 [#allocation5], 4
      %s225 = int_to_ptr.vmem [resolvable:$true] %s224
      %227 = dma.hbm_to_vmem [thread:$0]  %s5, 1024, %s225, %s216
    $region45: #{tpu_custom_call.1} parent=1 // pred_fallthru
      _
    %v228 = vld [vmem:[#allocation4] sm:$0xff]
    %v229 = vld [vmem:[#allocation4 + $0x8] sm:$0xff]
    %v230 = vld [vmem:[#allocation4 + $0x10] sm:$0xff]
    %v231 = vld [vmem:[#allocation4 + $0x18] sm:$0xff]
    %v232 = vld [vmem:[#allocation4 + $0x20] sm:$0xff]
    %v233 = vld [vmem:[#allocation4 + $0x28] sm:$0xff]
    %v234 = vld [vmem:[#allocation4 + $0x30] sm:$0xff]
    %v235 = vld [vmem:[#allocation4 + $0x38] sm:$0xff]
    %v236 = vld [vmem:[#allocation10 + $0x2] sm:$0x1]
    %v237 = vpack.c.bf16 %v207, %v206
    %v238 = vlaneseq
    %v239 = vshrl.u32 %v238, 7
    %v240 = vsub.s32 0, %v239
    %v241 = vrot.slane %v236, %v240
    %242 = vmatprep.subr.bf16.mxu0 0
    %243 = vmatpush1.bf16.msra.mxu0 %v228
    %244 = vmatprep.subr.bf16.mxu0 0
    %245 = vmatpush1.bf16.msra.mxu0 %v229
    %246 = vmatprep.subr.bf16.mxu0 0
    %247 = vmatpush1.bf16.msra.mxu0 %v230
    %248 = vmatprep.subr.bf16.mxu0 0
    %249 = vmatpush1.bf16.msra.mxu0 %v231
    %250 = vmatprep.subr.bf16.mxu0 0
    %251 = vmatpush1.bf16.msra.mxu0 %v232
    %252 = vmatprep.subr.bf16.mxu0 0
    %253 = vmatpush1.bf16.msra.mxu0 %v233
    %254 = vmatprep.subr.bf16.mxu0 0
    %255 = vmatpush1.bf16.msra.mxu0 %v234
    %256 = vmatprep.subr.bf16.mxu0 0
    %257 = vmatpush1.bf16.msra.mxu0 %v235
    %258 = vmatprep.subr.bf16.mxu0 0
    %259 = vmatpush1.bf16.msra.mxu0 0
    %260 = vmatprep.subr.bf16.mxu0 0
    %261 = vmatpush1.bf16.msra.mxu0 0
    %262 = vmatprep.subr.bf16.mxu0 0
    %263 = vmatpush1.bf16.msra.mxu0 0
    %264 = vmatprep.subr.bf16.mxu0 0
    %265 = vmatpush1.bf16.msra.mxu0 0
    %266 = vmatprep.subr.bf16.mxu0 0
    %267 = vmatpush1.bf16.msra.mxu0 0
    %268 = vmatprep.subr.bf16.mxu0 0
    %269 = vmatpush1.bf16.msra.mxu0 0
    %270 = vmatprep.subr.bf16.mxu0 0
    %271 = vmatpush1.bf16.msra.mxu0 0
    %272 = vmatprep.subr.bf16.mxu0 0
    %273 = vmatpush1.bf16.msra.mxu0 0
    %274 = vmatprep.mubr.bf16.mxu0 0
    %275 = vmatmul.mubr.bf16.gmra.mrb[0].mxu0 %v237
    %v276 = vpop.f32.mrb[0].mxu0
    %v277 = vadd.f32 %v241, %v276
    %v278 = vpop.f32.mrb[0].mxu0
    %v279 = vpop.f32.mrb[0].mxu0
    %v280 = vadd.f32 %v241, %v279
    %v281 = vpop.f32.mrb[0].mxu0
    %282 = vdwg.mxu0
    %v283 = vmax.f32 %v277, 0.0
    %v284 = vmax.f32 %v280, 0.0
    // Predicated region
    $region50: #{tpu_custom_call.1} parent=1 // pred_check
      %p285 = pneg %p43
    $region51: #{tpu_custom_call.1} parent=1 // pred_check_branch
      %287 = sbr.rel (%p285) target = $region53
    $region52: #{tpu_custom_call.1} parent=1 // pred_region
      %s288 = scalar_lea.sflag [#allocation6], 3
      %s289 = smul.u32 4, 16
      %s290 = smul.u32 %s289, 1
      %s291 = sshll.u32 %s290, 4
      %292 = dma.done %s288, %s291
    $region53: #{tpu_custom_call.1} parent=1 // pred_fallthru
      _
    %v293 = vld [vmem:[#allocation5] sm:$0xff]
    %v294 = vld [vmem:[#allocation5 + $0x8] sm:$0xff]
    %v295 = vld [vmem:[#allocation5 + $0x10] sm:$0xff]
    %v296 = vld [vmem:[#allocation5 + $0x18] sm:$0xff]
    %v297 = vld [vmem:[#allocation5 + $0x20] sm:$0xff]
    %v298 = vld [vmem:[#allocation5 + $0x28] sm:$0xff]
    %v299 = vld [vmem:[#allocation5 + $0x30] sm:$0xff]
    %v300 = vld [vmem:[#allocation5 + $0x38] sm:$0xff]
    %v301 = vld [vmem:[#allocation10 + $0x3] sm:$0x1]
    %v302 = vpack.c.bf16 %v284, %v283
    %v303 = vlaneseq
    %v304 = vshrl.u32 %v303, 7
    %v305 = vsub.s32 0, %v304
    %v306 = vrot.slane %v301, %v305
    %307 = vmatprep.subr.bf16.mxu0 0
    %308 = vmatpush1.bf16.msra.mxu0 %v293
    %309 = vmatprep.subr.bf16.mxu0 0
    %310 = vmatpush1.bf16.msra.mxu0 %v294
    %311 = vmatprep.subr.bf16.mxu0 0
    %312 = vmatpush1.bf16.msra.mxu0 %v295
    %313 = vmatprep.subr.bf16.mxu0 0
    %314 = vmatpush1.bf16.msra.mxu0 %v296
    %315 = vmatprep.subr.bf16.mxu0 0
    %316 = vmatpush1.bf16.msra.mxu0 %v297
    %317 = vmatprep.subr.bf16.mxu0 0
    %318 = vmatpush1.bf16.msra.mxu0 %v298
    %319 = vmatprep.subr.bf16.mxu0 0
    %320 = vmatpush1.bf16.msra.mxu0 %v299
    %321 = vmatprep.subr.bf16.mxu0 0
    %322 = vmatpush1.bf16.msra.mxu0 %v300
    %323 = vmatprep.subr.bf16.mxu0 0
    %324 = vmatpush1.bf16.msra.mxu0 0
    %325 = vmatprep.subr.bf16.mxu0 0
    %326 = vmatpush1.bf16.msra.mxu0 0
    %327 = vmatprep.subr.bf16.mxu0 0
    %328 = vmatpush1.bf16.msra.mxu0 0
    %329 = vmatprep.subr.bf16.mxu0 0
    %330 = vmatpush1.bf16.msra.mxu0 0
    %331 = vmatprep.subr.bf16.mxu0 0
    %332 = vmatpush1.bf16.msra.mxu0 0
    %333 = vmatprep.subr.bf16.mxu0 0
    %334 = vmatpush1.bf16.msra.mxu0 0
    %335 = vmatprep.subr.bf16.mxu0 0
    %336 = vmatpush1.bf16.msra.mxu0 0
    %337 = vmatprep.subr.bf16.mxu0 0
    %338 = vmatpush1.bf16.msra.mxu0 0
    %339 = vmatprep.mubr.bf16.mxu0 0
    %340 = vmatmul.mubr.bf16.gmra.mrb[0].mxu0 %v302
    %v341 = vpop.f32.mrb[0].mxu0
    %v342 = vadd.f32 %v306, %v341
    %v343 = vpop.f32.mrb[0].mxu0
    %v344 = vpop.f32.mrb[0].mxu0
    %v345 = vadd.f32 %v306, %v344
    %v346 = vpop.f32.mrb[0].mxu0
    %347 = vdwg.mxu0
    %348 = vst [vmem:[#allocation12] sm:$0xff] %v342
    %349 = vst [vmem:[#allocation12 + $0x8] sm:$0xff] %v345
    // Predicated region
    $region54: #{tpu_custom_call.1} parent=1 // pred_check
      _
    $region55: #{tpu_custom_call.1} parent=1 // pred_check_branch
      %351 = sbr.rel (0) target = $region57
    $region56: #{tpu_custom_call.1} parent=1 // pred_region
      %s353 = ssub.s32 256, 256
      %354 = vsyncadd [#allocation9], %s353
      %s355 = sshll.u32 [#allocation12], 4
      %s356 = int_to_ptr.vmem [resolvable:$true] %s355
      %361 = dma.vmem_to_hbm [thread:$0]  %s356, 256, %s6, [#allocation9], 128, 128, 8
    $region57: #{tpu_custom_call.1} parent=1 // pred_fallthru
      _
    // Predicated region
    $region58: #{tpu_custom_call.1} parent=1 // pred_check
      _
    $region59: #{tpu_custom_call.1} parent=1 // pred_check_branch
      %363 = sbr.rel (0) target = $region61
    $region60: #{tpu_custom_call.1} parent=1 // pred_region
      %364 = dma.done [#allocation9], 256
    $region61: #{tpu_custom_call.1} parent=1 // pred_fallthru
      _
    %365 = vsyncpa [#allocation8], 1
    %366 = vsyncpa [#allocation11], 1
    %367 = vsyncpa [#allocation9], 1
  %368 = vsyncmov [#allocation6]
  %s369 = vpop.sfrf %368
  %p370 = scmp.eq.s32.totalorder %s369, 0
  %p371 = pneg %p370
  %373 = shalt.err (%p371)
  %s374 = scalar_lea.sflag [#allocation6], 1
  %375 = vsyncmov %s374
  %s376 = vpop.sfrf %375
  %p377 = scmp.eq.s32.totalorder %s376, 0
  %p378 = pneg %p377
  %380 = shalt.err (%p378)
  %s381 = scalar_lea.sflag [#allocation6], 2
  %382 = vsyncmov %s381
  %s383 = vpop.sfrf %382
  %p384 = scmp.eq.s32.totalorder %s383, 0
  %p385 = pneg %p384
  %387 = shalt.err (%p385)
  %s388 = scalar_lea.sflag [#allocation6], 3
  %389 = vsyncmov %s388
  %s390 = vpop.sfrf %389
  %p391 = scmp.eq.s32.totalorder %s390, 0
  %p392 = pneg %p391
  %394 = shalt.err (%p392)

</llo_original>
